<compile_context>
chip_gen: v7x
topology: tpu7x:2x2x1
jax: 0.10.0
libtpu: 0.0.40
codegen_flags: <defaults>
</compile_context>

<pallas_src>
import jax
import jax.numpy as jnp
from jax.experimental import pallas as pl
from jax.experimental.pallas import tpu as pltpu

# ---- synthetic, scaled-down "dpt_large" configuration -----------------------
IMAGE_SIZE = (16, 16)          # real model uses (384, 384); scaled down
C_IN = 3                       # RGB
FEATURES = 32                  # hidden width of synthetic depth head
MEAN = (0.5, 0.5, 0.5)         # dpt_large normalization
STD = (0.5, 0.5, 0.5)
MAX_TM = 8192                  # pixels per grid step (lane axis); mem-bound kernel
PARAM_COLS = 8                 # packed params: [w1_c0, w1_c1, w1_c2, b1, -w2, -b2, pad, pad]


def _round_up(x, m):
    return (x + m - 1) // m * m


def midas_depth_kernel(x_ref, p_ref, o_ref):
    """Fused depth head on a pixels-on-lanes tile (one image, TM pixels).

    x_ref : (C_IN, TM)            f32 image tile (channels on sublanes, pixels on lanes)
    p_ref : (FEATURES, PARAM_COLS) f32 packed params:
              cols 0..2 = (w1 / std)^T   (Normalize folded in)
              col  3    = b1 - (mean/std) @ w1
              col  4    = -w2            (wrapper negation folded in)
              col  5    = -b2 in row 0, zeros elsewhere
    o_ref : (1, TM)               f32 negated depth (<= 0), lane-dense
    """
    x = x_ref[...]                                   # (C_IN, TM) f32
    p = p_ref[...]                                   # (FEATURES, PARAM_COLS)

    # Layer 1: K=3 contraction as 3 broadcasted VPU FMAs (don't use MXU for K=3).
    h = p[:, 0:1] * x[0:1, :]                        # (FEATURES, TM)
    for c in range(1, C_IN):
        h = h + p[:, c:c + 1] * x[c:c + 1, :]
    h = jnp.maximum(h + p[:, C_IN:C_IN + 1], 0.0)    # bias + ReLU

    # Layer 2: FEATURES -> 1 reduction over the sublane axis (XLU), not the MXU.
    d = jnp.sum(p[:, C_IN + 1:C_IN + 2] * h, axis=0, keepdims=True)  # (1, TM)
    d = d + p[0:1, C_IN + 2:C_IN + 3]                # add -b2

    # original: -relu(z);  with w2/b2 pre-negated this is min(-z, 0).
    o_ref[...] = jnp.minimum(d, 0.0)


def init_params():
    """Deterministic synthetic weights for the depth head (raw, un-folded)."""
    k1, k2 = jax.random.split(jax.random.PRNGKey(0))
    w1 = jax.random.normal(k1, (C_IN, FEATURES), jnp.float32) * 0.2
    b1 = jnp.linspace(-0.1, 0.1, FEATURES, dtype=jnp.float32)
    w2 = jax.random.normal(k2, (FEATURES, 1), jnp.float32) * 0.2
    b2 = jnp.array([0.05], dtype=jnp.float32)
    return w1, b1, w2, b2


def pack_params(params):
    """Fold T.Normalize into layer 1, the wrapper negation into layer 2, and
    pack everything into one (FEATURES, PARAM_COLS) array."""
    w1, b1, w2, b2 = params
    mean = jnp.array(MEAN, jnp.float32)
    std = jnp.array(STD, jnp.float32)
    # (x - mean)/std @ w1 + b1  ==  x @ (w1/std) + (b1 - (mean/std) @ w1)
    w1_t = (w1 / std[:, None]).T                              # (FEATURES, C_IN)
    b1_col = (b1 - (mean / std) @ w1).reshape(FEATURES, 1)
    # -relu(h @ w2 + b2)  ==  min(h @ (-w2) + (-b2), 0)
    w2_neg = (-w2).reshape(FEATURES, 1)
    b2_col = jnp.zeros((FEATURES, 1), jnp.float32).at[0, 0].set(-b2[0])
    pad = jnp.zeros((FEATURES, PARAM_COLS - (C_IN + 3)), jnp.float32)
    return jnp.concatenate([w1_t, b1_col, w2_neg, b2_col, pad], axis=1)


def midas_depth_forward(images_nchw, params):
    """images_nchw: (N, C, H, W) float32 -> (N, 1, H, W) float32 (negated depth)."""
    N, C, H, W = images_nchw.shape
    assert C == C_IN
    # TODO(synk): real forward bilinearly resizes to image_size when the spatial
    # shape differs; inputs here are constructed at image_size already.
    assert (H, W) == IMAGE_SIZE

    hw = H * W
    # (N, C, H*W) is a pure reshape of NCHW (same row-major layout) -> no extra
    # HBM pass before the kernel; the image is read exactly once, in f32.
    x = images_nchw.reshape(N, C, hw)

    # Largest lane-aligned pixel tile up to MAX_TM; pad only if needed.
    padded = _round_up(hw, 128)
    tm = min(MAX_TM, padded)
    padded = _round_up(padded, tm)
    if padded != hw:
        x = jnp.pad(x, ((0, 0), (0, 0), (0, padded - hw)))

    p = pack_params(params)

    cost = pl.CostEstimate(
        flops=2 * N * padded * (C_IN * FEATURES + FEATURES),
        transcendentals=0,
        bytes_accessed=N * padded * (C_IN + 1) * 4,
    )

    out = pl.pallas_call(
        midas_depth_kernel,
        out_shape=jax.ShapeDtypeStruct((N, 1, padded), jnp.float32),
        grid=(N, padded // tm),
        in_specs=[
            # image: squeeze the batch dim, (C_IN, tm) tile in the kernel
            pl.BlockSpec((None, C_IN, tm), lambda n, i: (n, 0, i)),
            # packed params: same block every step -> Pallas skips redundant DMA
            pl.BlockSpec((FEATURES, PARAM_COLS), lambda n, i: (0, 0)),
        ],
        out_specs=pl.BlockSpec((None, 1, tm), lambda n, i: (n, 0, i)),  # lane-dense
        # Both axes are independent -> shard across v7x's two TensorCores
        # (no-op on v5e/v6e); tiny test inputs collapse to a few steps, fine.
        compiler_params=pltpu.CompilerParams(
            dimension_semantics=("parallel", "parallel")),
        cost_estimate=cost,
    )(x, p)

    depth = out[:, :, :hw].reshape(N, 1, H, W)   # drop lane padding, restore NCHW
    return depth


def reference_forward(images_nchw, params):
    """Pure-JAX reference of the original (un-folded) computation."""
    w1, b1, w2, b2 = params
    mean = jnp.array(MEAN, jnp.float32).reshape(1, C_IN, 1, 1)
    std = jnp.array(STD, jnp.float32).reshape(1, C_IN, 1, 1)
    xn = (images_nchw - mean) / std                           # T.Normalize
    xn = jnp.transpose(xn, (0, 2, 3, 1))                      # NHWC (1x1 conv == matmul)
    h = jnp.maximum(xn @ w1 + b1, 0.0)
    d = jnp.maximum(h @ w2 + b2, 0.0)                         # non_negative=True head
    return -jnp.transpose(d, (0, 3, 1, 2))                    # negate, (N,1,H,W)


if __name__ == "__main__":
    N = 2
    H, W = IMAGE_SIZE
    key = jax.random.PRNGKey(0)
    images = jax.random.uniform(key, (N, C_IN, H, W), dtype=jnp.float32)

    params = init_params()
    depth = midas_depth_forward(images, params)
    jax.block_until_ready(depth)

    assert depth.shape == (N, 1, H, W), depth.shape
    assert depth.dtype == jnp.float32
    # non_negative head + outer negation => all outputs <= 0
    assert bool(jnp.all(depth <= 0.0))

    ref = reference_forward(images, params)
    err = float(jnp.max(jnp.abs(depth - ref)))
    assert jnp.allclose(depth, ref, atol=1e-4, rtol=1e-4), err

    print("KERNEL_OK")
</pallas_src>

<mosaic_0001>
module attributes {stable_mosaic.version = 11 : i64} {
  func.func @midas_depth_kernel(%arg0: i32, %arg1: i32, %arg2: memref<1x3x256xf32, #tpu.memory_space<vmem>>, %arg3: memref<32x8xf32, #tpu.memory_space<vmem>>, %arg4: memref<1x1x256xf32, #tpu.memory_space<vmem>>) attributes {dimension_semantics = [#tpu.dimension_semantics<parallel>, #tpu.dimension_semantics<parallel>], iteration_bounds = array<i64: 2, 1>, scalar_prefetch = 0 : i64, scratch_operands = 0 : i64, tpu.core_type = #tpu.core_type<tc>, window_params = [{transform_indices = @transform_0, window_bounds = array<i64: 1, 3, 256>}, {pipeline_mode = #tpu.pipeline_mode<synchronous>, transform_indices = @transform_1, window_bounds = array<i64: 32, 8>}, {transform_indices = @transform_2, window_bounds = array<i64: 1, 1, 256>}]} {
    %c0 = arith.constant 0 : index
    %c0_0 = arith.constant 0 : index
    %c0_1 = arith.constant 0 : index
    %0 = vector.load %arg2[%c0, %c0_0, %c0_1] : memref<1x3x256xf32, #tpu.memory_space<vmem>>, vector<1x3x256xf32>
    %1 = vector.shape_cast %0 : vector<1x3x256xf32> to vector<3x256xf32>
    %c0_2 = arith.constant 0 : index
    %c0_3 = arith.constant 0 : index
    %2 = vector.load %arg3[%c0_2, %c0_3] : memref<32x8xf32, #tpu.memory_space<vmem>>, vector<32x8xf32>
    %3 = vector.extract_strided_slice %2 {offsets = [0, 0], sizes = [32, 1], strides = [1, 1]} : vector<32x8xf32> to vector<32x1xf32>
    %4 = vector.extract_strided_slice %1 {offsets = [0, 0], sizes = [1, 256], strides = [1, 1]} : vector<3x256xf32> to vector<1x256xf32>
    %5 = vector.broadcast %3 : vector<32x1xf32> to vector<32x256xf32>
    %6 = vector.broadcast %4 : vector<1x256xf32> to vector<32x256xf32>
    %7 = arith.mulf %5, %6 : vector<32x256xf32>
    %8 = vector.extract_strided_slice %2 {offsets = [0, 1], sizes = [32, 1], strides = [1, 1]} : vector<32x8xf32> to vector<32x1xf32>
    %9 = vector.extract_strided_slice %1 {offsets = [1, 0], sizes = [1, 256], strides = [1, 1]} : vector<3x256xf32> to vector<1x256xf32>
    %10 = vector.broadcast %8 : vector<32x1xf32> to vector<32x256xf32>
    %11 = vector.broadcast %9 : vector<1x256xf32> to vector<32x256xf32>
    %12 = arith.mulf %10, %11 : vector<32x256xf32>
    %13 = arith.addf %7, %12 : vector<32x256xf32>
    %14 = vector.extract_strided_slice %2 {offsets = [0, 2], sizes = [32, 1], strides = [1, 1]} : vector<32x8xf32> to vector<32x1xf32>
    %15 = vector.extract_strided_slice %1 {offsets = [2, 0], sizes = [1, 256], strides = [1, 1]} : vector<3x256xf32> to vector<1x256xf32>
    %16 = vector.broadcast %14 : vector<32x1xf32> to vector<32x256xf32>
    %17 = vector.broadcast %15 : vector<1x256xf32> to vector<32x256xf32>
    %18 = arith.mulf %16, %17 : vector<32x256xf32>
    %19 = arith.addf %13, %18 : vector<32x256xf32>
    %20 = vector.extract_strided_slice %2 {offsets = [0, 3], sizes = [32, 1], strides = [1, 1]} : vector<32x8xf32> to vector<32x1xf32>
    %21 = vector.broadcast %20 : vector<32x1xf32> to vector<32x256xf32>
    %22 = arith.addf %19, %21 : vector<32x256xf32>
    %cst = arith.constant 0.000000e+00 : f32
    %23 = vector.broadcast %cst : f32 to vector<32x256xf32>
    %24 = arith.maximumf %22, %23 : vector<32x256xf32>
    %25 = vector.extract_strided_slice %2 {offsets = [0, 4], sizes = [32, 1], strides = [1, 1]} : vector<32x8xf32> to vector<32x1xf32>
    %26 = vector.broadcast %25 : vector<32x1xf32> to vector<32x256xf32>
    %27 = arith.mulf %26, %24 : vector<32x256xf32>
    %cst_4 = arith.constant dense<0.000000e+00> : vector<256xf32>
    %28 = vector.multi_reduction <add>, %27, %cst_4 [0] : vector<32x256xf32> to vector<256xf32>
    %29 = vector.shape_cast %28 : vector<256xf32> to vector<1x256xf32>
    %30 = vector.extract_strided_slice %2 {offsets = [0, 5], sizes = [1, 1], strides = [1, 1]} : vector<32x8xf32> to vector<1x1xf32>
    %31 = vector.broadcast %30 : vector<1x1xf32> to vector<1x256xf32>
    %32 = arith.addf %29, %31 : vector<1x256xf32>
    %cst_5 = arith.constant 0.000000e+00 : f32
    %33 = vector.broadcast %cst_5 : f32 to vector<1x256xf32>
    %34 = arith.minimumf %32, %33 : vector<1x256xf32>
    %c0_6 = arith.constant 0 : index
    %c0_7 = arith.constant 0 : index
    %c0_8 = arith.constant 0 : index
    %35 = vector.load %arg4[%c0_6, %c0_7, %c0_8] : memref<1x1x256xf32, #tpu.memory_space<vmem>>, vector<1x1x256xf32>
    %36 = vector.shape_cast %35 : vector<1x1x256xf32> to vector<1x256xf32>
    %37 = vector.shape_cast %34 : vector<1x256xf32> to vector<1x1x256xf32>
    tpu.vector_store %arg4[%c0_6, %c0_7, %c0_8], %37 {strides = array<i32>} : memref<1x1x256xf32, #tpu.memory_space<vmem>>, vector<1x1x256xf32>,
    return
  }
  func.func @transform_0(%arg0: i32, %arg1: i32) -> (i32, i32, i32) {
    %c0_i32 = arith.constant 0 : i32
    %c0_i32_0 = arith.constant 0 : i32
    return %arg0, %c0_i32, %arg1 : i32, i32, i32
  }
  func.func @transform_1(%arg0: i32, %arg1: i32) -> (i32, i32) {
    %c0_i32 = arith.constant 0 : i32
    %c0_i32_0 = arith.constant 0 : i32
    %c0_i32_1 = arith.constant 0 : i32
    return %c0_i32, %c0_i32_0 : i32, i32
  }
  func.func @transform_2(%arg0: i32, %arg1: i32) -> (i32, i32, i32) {
    %c0_i32 = arith.constant 0 : i32
    %c0_i32_0 = arith.constant 0 : i32
    return %arg0, %c0_i32, %arg1 : i32, i32, i32
  }
}

</mosaic_0001>

<llo_original>
// kernel: tpu_custom_call.1
$region0: #{tpu_custom_call.1}
  #allocation0 [shape = 'u32[]', space=smem, size = 0x4, offset = 0x4, fixed_abs, tag = 'smem constant byte address 0x4 - core index']
  #allocation1 [shape = 'u32[144,128]{1,0:T(1,128)}', space=vmem, size = 0x12000, scoped, tag = 'internal scratch']
  %s0 = inlined_call_operand.vmem [shape: f32[2,3,256], index: 0, kind: input, shape index: {}]
  %s1 = inlined_call_operand.vmem [shape: f32[32,8], index: 1, kind: input, shape index: {}]
  %s2 = inlined_call_operand.hbm [shape: f32[2,1,256], index: 2, kind: output, shape index: {}]
  %s3 = sld [smem:[#allocation0]]
  $region41: #{tpu_custom_call.1} parent=0
    _
  %s5 = ssub.s32 1, %s3
  %s6 = scalar_select 0, %s5, %s3
  $region1: #{tpu_custom_call.1} parent=0
    #allocation2 [shape = 'u8[2048]{0}', space=vmem, size = 0x800, scoped, tag = 'output window, operand 0']
    #allocation3 [shape = 's32[2]{0}', space=sflag, size = 0x8, scoped, tag = 'scoped memory for tpu_custom_call.1']
    %7 = vsyncpa [#allocation3], 0
    %s8 = scalar_lea.sflag [#allocation3], 1
    %9 = vsyncpa %s8, 0
    loop: start=0, step=1, limit=4
    $region2: #{tpu_custom_call.1} parent=1 // loop_pre_header
      _
    $region3: #{tpu_custom_call.1} parent=1 // loop_header
      %s11 = sphi 0, %s15
      %p12 = scmp.ge.s32.totalorder %s11, 4
      %s18 = sphi 0, %s30
      %s19 = sphi 0, %s26
      %s20 = sphi 0, %s18
      %s21 = sphi 0, %s19
      %s22 = sphi 0, %s20
      %s23 = sphi 0, %s21
      %s35 = sphi 0, %s37
      %s38 = sphi 0, %s35
      %s39 = sphi 0, %s38
      %s55 = sphi 0, %s39
      %s59 = sphi 0, %s59
      %s61 = sphi 0, %s59
      %s62 = sphi 0, %s61
      %s76 = sphi 0, %s62
      %s84 = sphi 0, %s86
      %s87 = sphi 0, %s84
      %s88 = sphi 0, %s87
      %s104 = sphi 0, %s88
    $region4: #{tpu_custom_call.1} parent=1 // loop_header_branch
      %14 = sbr.rel (%p12) target = $region8
    $region5: #{tpu_custom_call.1} parent=1 // loop_body
      %s16 = ssub.s32 %s11, 1
      %s17 = ssub.s32 %s11, 2
      %s24 = sadd.s32 1, %s19
      %p25 = scmp.ge.s32.totalorder %s24, 1
      %s26 = scalar_select %p25, 0, %s24
      %s27 = sadd.s32 1, %s18
      %s28 = scalar_select %p25, %s27, %s18
      %p29 = scmp.ge.s32.totalorder %s28, 2
      %s30 = scalar_select %p29, 0, %s28
      %s31 = ssub.s32 %s18, %s30
      %s32 = ssub.s32 %s19, %s26
      %s33 = sor.u32 %s31, %s32
      %p34 = scmp.eq.s32.totalorder %s33, 0
      %s36 = sadd.s32 %s35, 1
      %s37 = scalar_select %p34, %s35, %s36
      %p40 = pneg %p34
      %p41 = scmp.eq.s32.totalorder %s11, 1
      %p42 = por %p40, %p41
      %p43 = scmp.ne.s32.totalorder %s35, %s38
      %p44 = scmp.eq.s32.totalorder %s11, 0
      %p45 = por %p43, %p44
      %p46 = scmp.ne.s32.totalorder %s35, %s38
      %p47 = scmp.eq.s32.totalorder %s16, 1
      %p48 = por %p46, %p47
      %p49 = scmp.ne.s32.totalorder %s38, %s39
      %p50 = scmp.eq.s32.totalorder %s16, 0
      %p51 = por %p49, %p50
      %p52 = scmp.ne.s32.totalorder %s38, %s39
      %p53 = scmp.eq.s32.totalorder %s17, 1
      %p54 = por %p52, %p53
      %p56 = scmp.ne.s32.totalorder %s39, %s55
      %p57 = scmp.eq.s32.totalorder %s17, 0
      %p58 = por %p56, %p57
      %s60 = sadd.s32 %s59, 1
      %p63 = scmp.eq.s32.totalorder %s11, 1
      %p64 = scmp.ne.s32.totalorder %s59, %s61
      %p65 = scmp.eq.s32.totalorder %s11, 0
      %p66 = por %p64, %p65
      %p67 = scmp.ne.s32.totalorder %s59, %s61
      %p68 = scmp.eq.s32.totalorder %s16, 1
      %p69 = por %p67, %p68
      %p70 = scmp.ne.s32.totalorder %s61, %s62
      %p71 = scmp.eq.s32.totalorder %s16, 0
      %p72 = por %p70, %p71
      %p73 = scmp.ne.s32.totalorder %s61, %s62
      %p74 = scmp.eq.s32.totalorder %s17, 1
      %p75 = por %p73, %p74
      %p77 = scmp.ne.s32.totalorder %s62, %s76
      %p78 = scmp.eq.s32.totalorder %s17, 0
      %p79 = por %p77, %p78
      %s80 = ssub.s32 %s18, %s30
      %s81 = ssub.s32 %s19, %s26
      %s82 = sor.u32 %s80, %s81
      %p83 = scmp.eq.s32.totalorder %s82, 0
      %s85 = sadd.s32 %s84, 1
      %s86 = scalar_select %p83, %s84, %s85
      %p89 = pneg %p83
      %p90 = scmp.eq.s32.totalorder %s11, 1
      %p91 = por %p89, %p90
      %p92 = scmp.ne.s32.totalorder %s84, %s87
      %p93 = scmp.eq.s32.totalorder %s11, 0
      %p94 = por %p92, %p93
      %p95 = scmp.ne.s32.totalorder %s84, %s87
      %p96 = scmp.eq.s32.totalorder %s16, 1
      %p97 = por %p95, %p96
      %p98 = scmp.ne.s32.totalorder %s87, %s88
      %p99 = scmp.eq.s32.totalorder %s16, 0
      %p100 = por %p98, %p99
      %p101 = scmp.ne.s32.totalorder %s87, %s88
      %p102 = scmp.eq.s32.totalorder %s17, 1
      %p103 = por %p101, %p102
      %p105 = scmp.ne.s32.totalorder %s88, %s104
      %p106 = scmp.eq.s32.totalorder %s17, 0
      %p107 = por %p105, %p106
      %p108 = scmp.le.s32.totalorder 1, %s11
      %p109 = scmp.lt.s32.totalorder %s11, 3
      %p110 = pnand %p108, %p109
      %p111 = pneg %p110
      // Predicated region
      $region9: #{tpu_custom_call.1} parent=5 // pred_check
        _
      $region10: #{tpu_custom_call.1} parent=5 // pred_check_branch
        %113 = sbr.rel (%p110) target = $region12
      $region11: #{tpu_custom_call.1} parent=5 // pred_region
        %s114 = ssub.s32 %s11, 1
        // Predicated region
        $region13: #{tpu_custom_call.1} parent=11 // pred_check
          %p115 = pneg %p72
        $region14: #{tpu_custom_call.1} parent=11 // pred_check_branch
          %117 = sbr.rel (%p115) target = $region16
        $region15: #{tpu_custom_call.1} parent=11 // pred_region
          _
        $region16: #{tpu_custom_call.1} parent=11 // pred_fallthru
          _
      $region12: #{tpu_custom_call.1} parent=5 // pred_fallthru
        _
      %p118 = scmp.lt.s32.totalorder %s11, 2
      // Predicated region
      $region17: #{tpu_custom_call.1} parent=5 // pred_check
        %p119 = pneg %p118
      $region18: #{tpu_custom_call.1} parent=5 // pred_check_branch
        %121 = sbr.rel (%p119) target = $region20
      $region19: #{tpu_custom_call.1} parent=5 // pred_region
        // Predicated region
        $region21: #{tpu_custom_call.1} parent=19 // pred_check
          %p122 = pneg %p45
        $region22: #{tpu_custom_call.1} parent=19 // pred_check_branch
          %124 = sbr.rel (%p122) target = $region24
        $region23: #{tpu_custom_call.1} parent=19 // pred_region
          %s125 = smul.u32 2, %s19
          %p126 = scmp.lt.s32.totalorder %s18, 1
          %s127 = scalar_select %p126, %s18, 1
          %p128 = scmp.lt.s32.totalorder %s125, 1
          %s129 = scalar_select %p128, %s125, 1
          %s130 = smul.addr %s127, 2
          %s131 = sadd.s32 %s129, %s130
          %s132 = smul.addr %s131, 4
          %s133 = scalar_lea.vmem %s0, %s132
          %s134 = smul.u32 2, %s19
        $region24: #{tpu_custom_call.1} parent=19 // pred_fallthru
          _
      $region20: #{tpu_custom_call.1} parent=5 // pred_fallthru
        _
      %p135 = scmp.le.s32.totalorder 1, %s11
      %p136 = scmp.lt.s32.totalorder %s11, 3
      %p137 = pnand %p135, %p136
      %p138 = pneg %p137
      // Predicated region
      $region25: #{tpu_custom_call.1} parent=5 // pred_check
        _
      $region26: #{tpu_custom_call.1} parent=5 // pred_check_branch
        %140 = sbr.rel (%p137) target = $region28
      $region27: #{tpu_custom_call.1} parent=5 // pred_region
        %s141 = ssub.s32 %s11, 1
        %s142 = smul.u32 2, %s21
        %p143 = scmp.lt.s32.totalorder %s20, 1
        %s144 = scalar_select %p143, %s20, 1
        %p145 = scmp.lt.s32.totalorder %s142, 1
        %s146 = scalar_select %p145, %s142, 1
        %s147 = smul.addr %s144, 2
        %s148 = sadd.s32 %s146, %s147
        %s149 = smul.addr %s148, 4
        %s150 = scalar_lea.vmem %s0, %s149
        %p151 = pneg %p51
        %p152 = pneg %p48
        %p153 = pneg %p72
        %p154 = pneg %p69
        %p155 = pneg %p100
        %p156 = pneg %p97
        %s157 = sand.u32 %s87, 1
        %s158 = scalar_lea.sflag [#allocation3], %s157
        %s159 = sand.u32 %s87, 1
        %s160 = smul.addr %s159, 2
        %s161 = scalar_lea.vmem [#allocation2], %s160
        %s162 = smul.u32 2, %s21
        %p163 = scmp.lt.s32.totalorder %s20, 1
        %s164 = scalar_select %p163, %s20, 1
        %p165 = scmp.lt.s32.totalorder %s162, 1
        %s166 = scalar_select %p165, %s162, 1
        %s167 = smul.addr %s164, 2
        %s168 = sadd.s32 %s166, %s167
        %s169 = smul.addr %s168, 4
        %s170 = scalar_lea.vmem %s0, %s169
        %s171 = smul.u32 2, %s21
        %s172 = smul.u32 2, %s21
        %v173 = vld [vmem:[%s170] sm:$0x77]
        %v174 = vld [vmem:[%s1] sm:$0xff]
        %v175 = vld [vmem:[%s1 + $0x8] sm:$0xff]
        %v176 = vld [vmem:[%s1 + $0x10] sm:$0xff]
        %v177 = vld [vmem:[%s1 + $0x18] sm:$0xff]
        %179 = vset.pattern.permute.xlu0 0
        %180 = vperm.xlu0 %179, %v174
        %v181 = vpop.permute.xlu0 %180
        %184 = vset.pattern.permute.xlu0 0
        %185 = vperm.xlu0 %184, %v175
        %v186 = vpop.permute.xlu0 %185
        %189 = vset.pattern.permute.xlu0 0
        %190 = vperm.xlu0 %189, %v176
        %v191 = vpop.permute.xlu0 %190
        %194 = vset.pattern.permute.xlu0 0
        %195 = vperm.xlu0 %194, %v177
        %v196 = vpop.permute.xlu0 %195
        %v199 = vlaneseq
        %v200 = vshrl.u32 %v199, 7
        %v201 = vsub.s32 0, %v200
        %v202 = vrot.slane %v173, %v201
        %v203 = vlaneseq
        %v204 = vshrl.u32 %v203, 7
        %v205 = vsub.s32 4, %v204
        %v206 = vrot.slane %v173, %v205
        %v209 = vlaneseq
        %v210 = vshrl.u32 %v209, 7
        %v211 = vsub.s32 0, %v210
        %v212 = vrot.slane %v202, %v211
        %v213 = vlaneseq
        %v214 = vshrl.u32 %v213, 7
        %v215 = vsub.s32 0, %v214
        %v216 = vrot.slane %v206, %v215
        %v217 = vmul.f32 %v181, %v212
        %v218 = vmul.f32 %v181, %v216
        %v219 = vmul.f32 %v186, %v212
        %v220 = vmul.f32 %v186, %v216
        %v221 = vmul.f32 %v191, %v212
        %v222 = vmul.f32 %v191, %v216
        %v223 = vmul.f32 %v196, %v212
        %v224 = vmul.f32 %v196, %v216
        %225 = vset.pattern.permute.xlu0 1
        %226 = vperm.xlu0 %225, %v174
        %v227 = vpop.permute.xlu0 %226
        %229 = vset.pattern.permute.xlu0 1
        %230 = vperm.xlu0 %229, %v175
        %v231 = vpop.permute.xlu0 %230
        %233 = vset.pattern.permute.xlu0 1
        %234 = vperm.xlu0 %233, %v176
        %v235 = vpop.permute.xlu0 %234
        %237 = vset.pattern.permute.xlu0 1
        %238 = vperm.xlu0 %237, %v177
        %v239 = vpop.permute.xlu0 %238
        %v241 = vlaneseq
        %v242 = vshrl.u32 %v241, 7
        %v243 = vsub.s32 1, %v242
        %v244 = vrot.slane %v173, %v243
        %v245 = vlaneseq
        %v246 = vshrl.u32 %v245, 7
        %v247 = vsub.s32 5, %v246
        %v248 = vrot.slane %v173, %v247
        %v251 = vlaneseq
        %v252 = vshrl.u32 %v251, 7
        %v253 = vsub.s32 1, %v252
        %v254 = vrot.slane %v244, %v253
        %v255 = vlaneseq
        %v256 = vshrl.u32 %v255, 7
        %v257 = vsub.s32 1, %v256
        %v258 = vrot.slane %v248, %v257
        %v259 = vmul.f32 %v227, %v254
        %v260 = vmul.f32 %v227, %v258
        %v261 = vmul.f32 %v231, %v254
        %v262 = vmul.f32 %v231, %v258
        %v263 = vmul.f32 %v235, %v254
        %v264 = vmul.f32 %v235, %v258
        %v265 = vmul.f32 %v239, %v254
        %v266 = vmul.f32 %v239, %v258
        %v267 = vadd.f32 %v217, %v259
        %v268 = vadd.f32 %v218, %v260
        %v269 = vadd.f32 %v219, %v261
        %v270 = vadd.f32 %v220, %v262
        %v271 = vadd.f32 %v221, %v263
        %v272 = vadd.f32 %v222, %v264
        %v273 = vadd.f32 %v223, %v265
        %v274 = vadd.f32 %v224, %v266
        %275 = vset.pattern.permute.xlu0 2
        %276 = vperm.xlu0 %275, %v174
        %v277 = vpop.permute.xlu0 %276
        %279 = vset.pattern.permute.xlu0 2
        %280 = vperm.xlu0 %279, %v175
        %v281 = vpop.permute.xlu0 %280
        %283 = vset.pattern.permute.xlu0 2
        %284 = vperm.xlu0 %283, %v176
        %v285 = vpop.permute.xlu0 %284
        %287 = vset.pattern.permute.xlu0 2
        %288 = vperm.xlu0 %287, %v177
        %v289 = vpop.permute.xlu0 %288
        %v291 = vlaneseq
        %v292 = vshrl.u32 %v291, 7
        %v293 = vsub.s32 2, %v292
        %v294 = vrot.slane %v173, %v293
        %v295 = vlaneseq
        %v296 = vshrl.u32 %v295, 7
        %v297 = vsub.s32 6, %v296
        %v298 = vrot.slane %v173, %v297
        %v301 = vlaneseq
        %v302 = vshrl.u32 %v301, 7
        %v303 = vsub.s32 2, %v302
        %v304 = vrot.slane %v294, %v303
        %v305 = vlaneseq
        %v306 = vshrl.u32 %v305, 7
        %v307 = vsub.s32 2, %v306
        %v308 = vrot.slane %v298, %v307
        %v309 = vmul.f32 %v277, %v304
        %v310 = vmul.f32 %v277, %v308
        %v311 = vmul.f32 %v281, %v304
        %v312 = vmul.f32 %v281, %v308
        %v313 = vmul.f32 %v285, %v304
        %v314 = vmul.f32 %v285, %v308
        %v315 = vmul.f32 %v289, %v304
        %v316 = vmul.f32 %v289, %v308
        %v317 = vadd.f32 %v267, %v309
        %v318 = vadd.f32 %v268, %v310
        %v319 = vadd.f32 %v269, %v311
        %v320 = vadd.f32 %v270, %v312
        %v321 = vadd.f32 %v271, %v313
        %v322 = vadd.f32 %v272, %v314
        %v323 = vadd.f32 %v273, %v315
        %v324 = vadd.f32 %v274, %v316
        %325 = vset.pattern.permute.xlu0 3
        %326 = vperm.xlu0 %325, %v174
        %v327 = vpop.permute.xlu0 %326
        %329 = vset.pattern.permute.xlu0 3
        %330 = vperm.xlu0 %329, %v175
        %v331 = vpop.permute.xlu0 %330
        %333 = vset.pattern.permute.xlu0 3
        %334 = vperm.xlu0 %333, %v176
        %v335 = vpop.permute.xlu0 %334
        %337 = vset.pattern.permute.xlu0 3
        %338 = vperm.xlu0 %337, %v177
        %v339 = vpop.permute.xlu0 %338
        %v341 = vadd.f32 %v317, %v327
        %v342 = vadd.f32 %v318, %v327
        %v343 = vadd.f32 %v319, %v331
        %v344 = vadd.f32 %v320, %v331
        %v345 = vadd.f32 %v321, %v335
        %v346 = vadd.f32 %v322, %v335
        %v347 = vadd.f32 %v323, %v339
        %v348 = vadd.f32 %v324, %v339
        %v349 = vmax.f32 %v341, 0.0
        %v350 = vmax.f32 %v342, 0.0
        %v351 = vmax.f32 %v343, 0.0
        %v352 = vmax.f32 %v344, 0.0
        %v353 = vmax.f32 %v345, 0.0
        %v354 = vmax.f32 %v346, 0.0
        %v355 = vmax.f32 %v347, 0.0
        %v356 = vmax.f32 %v348, 0.0
        %357 = vset.pattern.permute.xlu0 4
        %358 = vperm.xlu0 %357, %v174
        %v359 = vpop.permute.xlu0 %358
        %361 = vset.pattern.permute.xlu0 4
        %362 = vperm.xlu0 %361, %v175
        %v363 = vpop.permute.xlu0 %362
        %365 = vset.pattern.permute.xlu0 4
        %366 = vperm.xlu0 %365, %v176
        %v367 = vpop.permute.xlu0 %366
        %369 = vset.pattern.permute.xlu0 4
        %370 = vperm.xlu0 %369, %v177
        %v371 = vpop.permute.xlu0 %370
        %v373 = vmul.f32 %v359, %v349
        %v374 = vmul.f32 %v359, %v350
        %v375 = vmul.f32 %v363, %v351
        %v376 = vmul.f32 %v363, %v352
        %v377 = vmul.f32 %v367, %v353
        %v378 = vmul.f32 %v367, %v354
        %v379 = vmul.f32 %v371, %v355
        %v380 = vmul.f32 %v371, %v356
        %v381 = vadd.f32 %v373, %v375
        %v382 = vadd.f32 %v381, %v377
        %v383 = vadd.f32 %v382, %v379
        %v384 = vrot.slane %v383, 4
        %v385 = vadd.f32 %v383, %v384
        %v386 = vrot.slane %v385, 2
        %v387 = vadd.f32 %v385, %v386
        %v388 = vrot.slane %v387, 1
        %v389 = vadd.f32 %v387, %v388
        %v390 = vadd.f32 %v374, %v376
        %v391 = vadd.f32 %v390, %v378
        %v392 = vadd.f32 %v391, %v380
        %v393 = vrot.slane %v392, 4
        %v394 = vadd.f32 %v392, %v393
        %v395 = vrot.slane %v394, 2
        %v396 = vadd.f32 %v394, %v395
        %v397 = vrot.slane %v396, 1
        %v398 = vadd.f32 %v396, %v397
        %399 = vset.pattern.permute.xlu0 5
        %400 = vperm.xlu0 %399, %v174
        %v401 = vpop.permute.xlu0 %400
        %v403 = vadd.f32 %v389, %v401
        %v404 = vadd.f32 %v398, %v401
        %v405 = vmin.f32 %v403, 0.0
        %v406 = vmin.f32 %v404, 0.0
        %v409 = vcombine.low %v405, %v406
        %v411 = vunpack.c.l.s4 1966171168
        %v412 = vunpack.c.0.s8 %v411
        %v413 = vlaneseq
        %v414 = vshrl.u32 %v413, 7
        %v415 = vsub.s32 %v412, %v414
        %v416 = vrot.slane %v409, %v415
        %v418 = vunpack.c.l.s4 1966171168
        %v419 = vunpack.c.0.s8 %v418
        %v420 = vlaneseq
        %v421 = vshrl.u32 %v420, 7
        %v422 = vsub.s32 %v419, %v421
        %v423 = vrot.slane %v416, %v422
        %v425 = vlaneseq
        %vm426 = vcmp.ge.s32.totalorder %v425, 0
        %vm427 = vcmp.lt.s32.totalorder %v425, 256
        %vm428 = vmand %vm426, %vm427
        %429 = vst.msk [vmem:[%s161] sm:$0x3] %vm428, %v423
        %s430 = sand.u32 %s87, 1
        %s431 = scalar_lea.sflag [#allocation3], %s430
        %s432 = sand.u32 %s87, 1
        %s433 = smul.addr %s432, 2
        %s434 = scalar_lea.vmem [#allocation2], %s433
        // Predicated region
        $region29: #{tpu_custom_call.1} parent=27 // pred_check
          %p435 = pneg %p97
        $region30: #{tpu_custom_call.1} parent=27 // pred_check_branch
          %437 = sbr.rel (%p435) target = $region32
        $region31: #{tpu_custom_call.1} parent=27 // pred_region
          %s438 = smul.u32 2, %s21
          %s440 = ssub.s32 32, 32
          %441 = vsyncadd %s431, %s440
          %s442 = smul.addr %s20, 2
          %s443 = sadd.s32 %s438, %s442
          %s444 = smul.addr %s443, 16
          %s445 = scalar_lea.hbm %s2, %s444
          %s447 = sshll.u32 %s434, 4
          %s448 = int_to_ptr.vmem [resolvable:$true] %s447
          %450 = dma.vmem_to_hbm [thread:$0]  %s448, 32, %s445, %s431
        $region32: #{tpu_custom_call.1} parent=27 // pred_fallthru
          _
      $region28: #{tpu_custom_call.1} parent=5 // pred_fallthru
        _
      %p451 = scmp.le.s32.totalorder 2, %s11
      // Predicated region
      $region33: #{tpu_custom_call.1} parent=5 // pred_check
        %p452 = pneg %p451
      $region34: #{tpu_custom_call.1} parent=5 // pred_check_branch
        %454 = sbr.rel (%p452) target = $region36
      $region35: #{tpu_custom_call.1} parent=5 // pred_region
        %s455 = ssub.s32 %s11, 2
        // Predicated region
        $region37: #{tpu_custom_call.1} parent=35 // pred_check
          %p456 = pneg %p103
        $region38: #{tpu_custom_call.1} parent=35 // pred_check_branch
          %458 = sbr.rel (%p456) target = $region40
        $region39: #{tpu_custom_call.1} parent=35 // pred_region
          %s459 = sand.u32 %s88, 1
          %s460 = scalar_lea.sflag [#allocation3], %s459
          %s461 = sand.u32 %s88, 1
          %s462 = smul.addr %s461, 2
          %s463 = scalar_lea.vmem [#allocation2], %s462
          %464 = dma.done %s460, 32
        $region40: #{tpu_custom_call.1} parent=35 // pred_fallthru
          _
      $region36: #{tpu_custom_call.1} parent=5 // pred_fallthru
        _
    $region6: #{tpu_custom_call.1} parent=1 // loop_footer
      %s15 = sadd.s32 1, %s11
    $region7: #{tpu_custom_call.1} parent=1 // loop_footer_branch
      %10 = sbr.rel target = $region3
    $region8: #{tpu_custom_call.1} parent=1 // loop_exit
      _
    %465 = vsyncpa [#allocation3], 1
    %s466 = scalar_lea.sflag [#allocation3], 1
    %467 = vsyncpa %s466, 1

</llo_original>
